<compile_context>
chip_gen: v7x
topology: tpu7x:2x2x1
jax: 0.10.0
libtpu: 0.0.40
codegen_flags: <defaults>
</compile_context>

<pallas_src>
import functools

import jax
import jax.numpy as jnp
from jax.experimental import pallas as pl
from jax.experimental.pallas import tpu as pltpu

# (in_features, out_features) for each of the 9 Linear layers.
LAYER_DIMS = [
    (4, 4), (4, 4), (4, 8),   # block 0
    (8, 4), (4, 4), (4, 4),   # block 1
    (4, 6), (6, 8), (8, 2),   # block 2
]
IN_DIM = LAYER_DIMS[0][0]     # 4
OUT_DIM = LAYER_DIMS[-1][1]   # 2


def _round_up(v, m):
    return ((v + m - 1) // m) * m


def _default_min_grid_steps():
    """v7x has 2 TensorCores sharing the 'parallel' grid axis -> keep >=2 grid
    steps there so the second TC isn't idle.  Single-TC parts (v5e/v6e) prefer
    the smallest possible grid (fewest ~0.35us fixed-overhead steps)."""
    try:
        kind = jax.devices()[0].device_kind.lower()
    except Exception:
        return 1
    return 2 if ("v7" in kind or "7x" in kind) else 1


def _choose_tile(batch, tb_lanes, min_grid_steps):
    """Lane-tile (multiple of 128) for the batch axis."""
    b128 = _round_up(max(batch, 1), 128)
    tb = min(_round_up(tb_lanes, 128), b128)
    if min_grid_steps > 1:
        # Split so the 'parallel' grid axis has >= min_grid_steps steps (v7x).
        tb = min(tb, _round_up(pl.cdiv(b128, min_grid_steps), 128))
    return max(tb, 128)


def _make_affine_kernel(in_dim, out_dim):
    """y_t[j, :] = sum_i W_eff[i, j] * x_t[i, :] + b_eff[j] (pure VPU FMAs)."""

    def kernel(p_ref, x_ref, o_ref):
        # p_ref: SMEM (in_dim*out_dim + out_dim,) f32
        #        layout: W_eff row-major (in_dim, out_dim) then b_eff (out_dim,)
        # x_ref: VMEM (in_dim, TB)   -- features on sublanes, batch on lanes
        # o_ref: VMEM (out_dim, TB)
        x = x_ref[...].astype(jnp.float32)
        rows = [x[i:i + 1, :] for i in range(in_dim)]      # hoisted row slices
        outs = []
        for j in range(out_dim):
            acc = rows[0] * p_ref[j] + p_ref[in_dim * out_dim + j]
            for i in range(1, in_dim):
                acc = acc + rows[i] * p_ref[i * out_dim + j]
            outs.append(acc)
        # Single unmasked block store instead of out_dim sublane-sliced stores.
        o_ref[...] = jnp.concatenate(outs, axis=0).astype(o_ref.dtype)

    return kernel


def collapse_affine_chain(params):
    """Fold the 9 Linear layers into one affine map (exact: no activations)."""
    w_eff, b_eff = params[0]                 # (4, 4), (1, 4)
    for (w, b) in params[1:]:
        b_eff = b_eff @ w + b
        w_eff = w_eff @ w
    return w_eff, b_eff                      # (4, 2), (1, 2)


def pack_effective_params(params):
    """Run ONCE per parameter set (hoisted out of the per-forward path)."""
    w_eff, b_eff = collapse_affine_chain(params)
    return jnp.concatenate(
        [w_eff.reshape(-1), b_eff.reshape(-1)]).astype(jnp.float32)


@functools.partial(jax.jit, static_argnames=("tb_lanes", "min_grid_steps"))
def cpu_offload_model_forward(x, packed_params, *, tb_lanes=8192,
                              min_grid_steps=1):
    """x: (B, 4) float32.  packed_params: (10,) slab from pack_effective_params."""
    B, in_dim = x.shape
    out_dim = packed_params.shape[0] // (in_dim + 1)

    tb = _choose_tile(B, tb_lanes, min_grid_steps)

    # Lane-dense (features, batch) layout; the transpose is fused by XLA inside
    # this jitted program.  No jnp.pad: the pl.cdiv grid + Pallas ragged
    # final-block handling cover any remainder.
    # TODO(synk): a fully layout-fused variant (interleaved (B//32,128) slab +
    # in-kernel pltpu.roll contraction) would also remove this transpose pass.
    x_t = x.T.astype(jnp.float32)                          # (in_dim, B)

    out_t = pl.pallas_call(
        _make_affine_kernel(in_dim, out_dim),
        out_shape=jax.ShapeDtypeStruct((out_dim, B), jnp.float32),
        grid=(pl.cdiv(B, tb),),
        in_specs=[
            pl.BlockSpec(memory_space=pltpu.MemorySpace.SMEM),   # packed params
            pl.BlockSpec((in_dim, tb), lambda i: (0, i)),        # x tile
        ],
        out_specs=pl.BlockSpec((out_dim, tb), lambda i: (0, i)),
        compiler_params=pltpu.CompilerParams(
            dimension_semantics=("parallel",)),
        cost_estimate=pl.CostEstimate(
            flops=2 * in_dim * out_dim * B,
            transcendentals=0,
            bytes_accessed=(in_dim + out_dim) * 4 * B),
    )(packed_params, x_t)

    return out_t.T                                         # (B, out_dim)


def init_params(key):
    """Deterministic init mimicking PyTorch's default Linear init:
    U(-1/sqrt(fan_in), 1/sqrt(fan_in)) for both weight and bias."""
    params = []
    for (fan_in, fan_out) in LAYER_DIMS:
        key, kw, kb = jax.random.split(key, 3)
        bound = 1.0 / jnp.sqrt(jnp.float32(fan_in))
        w = jax.random.uniform(kw, (fan_in, fan_out), jnp.float32,
                               minval=-bound, maxval=bound)
        b = jax.random.uniform(kb, (1, fan_out), jnp.float32,
                               minval=-bound, maxval=bound)
        params.append((w, b))
    return params


def reference_forward(x, params):
    h = x
    for (w, b) in params:
        h = h @ w + b
    return h


if __name__ == "__main__":
    key = jax.random.PRNGKey(0)
    key, kx = jax.random.split(key)

    batch = 1024
    x = jax.random.normal(kx, (batch, 4), jnp.float32)
    params = init_params(key)

    # Hoisted: collapse + pack the 9 layers once per parameter set.
    packed = pack_effective_params(params)

    # v7x -> 2 grid steps (feed both TensorCores); v5e/v6e -> 1 step.
    min_steps = _default_min_grid_steps()

    out = cpu_offload_model_forward(x, packed, tb_lanes=8192,
                                    min_grid_steps=min_steps)
    out = jax.block_until_ready(out)

    ref = reference_forward(x, params)
    assert out.shape == (batch, 2), out.shape
    assert jnp.allclose(out, ref, atol=1e-5, rtol=1e-5), (
        "Pallas output does not match pure-JAX reference")

    print("KERNEL_OK")
</pallas_src>

<mosaic_0001>
module attributes {stable_mosaic.version = 11 : i64} {
  func.func @kernel(%arg0: i32, %arg1: memref<10xf32, #tpu.memory_space<smem>>, %arg2: memref<4x1024xf32, #tpu.memory_space<vmem>>, %arg3: memref<2x1024xf32, #tpu.memory_space<vmem>>) attributes {dimension_semantics = [#tpu.dimension_semantics<parallel>], iteration_bounds = array<i64: 1>, scalar_prefetch = 0 : i64, scratch_operands = 0 : i64, tpu.core_type = #tpu.core_type<tc>, window_params = [{transform_indices = @transform_0, window_bounds = array<i64: 10>}, {transform_indices = @transform_1, window_bounds = array<i64: 4, 1024>}, {transform_indices = @transform_2, window_bounds = array<i64: 2, 1024>}]} {
    %c0 = arith.constant 0 : index
    %c0_0 = arith.constant 0 : index
    %0 = vector.load %arg2[%c0, %c0_0] : memref<4x1024xf32, #tpu.memory_space<vmem>>, vector<4x1024xf32>
    %1 = vector.extract_strided_slice %0 {offsets = [0, 0], sizes = [1, 1024], strides = [1, 1]} : vector<4x1024xf32> to vector<1x1024xf32>
    %2 = vector.extract_strided_slice %0 {offsets = [1, 0], sizes = [1, 1024], strides = [1, 1]} : vector<4x1024xf32> to vector<1x1024xf32>
    %3 = vector.extract_strided_slice %0 {offsets = [2, 0], sizes = [1, 1024], strides = [1, 1]} : vector<4x1024xf32> to vector<1x1024xf32>
    %4 = vector.extract_strided_slice %0 {offsets = [3, 0], sizes = [1, 1024], strides = [1, 1]} : vector<4x1024xf32> to vector<1x1024xf32>
    %c0_1 = arith.constant 0 : index
    %5 = memref.load %arg1[%c0_1] : memref<10xf32, #tpu.memory_space<smem>>
    %6 = vector.broadcast %5 : f32 to vector<1x1024xf32>
    %7 = arith.mulf %1, %6 : vector<1x1024xf32>
    %c8 = arith.constant 8 : index
    %8 = memref.load %arg1[%c8] : memref<10xf32, #tpu.memory_space<smem>>
    %9 = vector.broadcast %8 : f32 to vector<1x1024xf32>
    %10 = arith.addf %7, %9 : vector<1x1024xf32>
    %c2 = arith.constant 2 : index
    %11 = memref.load %arg1[%c2] : memref<10xf32, #tpu.memory_space<smem>>
    %12 = vector.broadcast %11 : f32 to vector<1x1024xf32>
    %13 = arith.mulf %2, %12 : vector<1x1024xf32>
    %14 = arith.addf %10, %13 : vector<1x1024xf32>
    %c4 = arith.constant 4 : index
    %15 = memref.load %arg1[%c4] : memref<10xf32, #tpu.memory_space<smem>>
    %16 = vector.broadcast %15 : f32 to vector<1x1024xf32>
    %17 = arith.mulf %3, %16 : vector<1x1024xf32>
    %18 = arith.addf %14, %17 : vector<1x1024xf32>
    %c6 = arith.constant 6 : index
    %19 = memref.load %arg1[%c6] : memref<10xf32, #tpu.memory_space<smem>>
    %20 = vector.broadcast %19 : f32 to vector<1x1024xf32>
    %21 = arith.mulf %4, %20 : vector<1x1024xf32>
    %22 = arith.addf %18, %21 : vector<1x1024xf32>
    %c1 = arith.constant 1 : index
    %23 = memref.load %arg1[%c1] : memref<10xf32, #tpu.memory_space<smem>>
    %24 = vector.broadcast %23 : f32 to vector<1x1024xf32>
    %25 = arith.mulf %1, %24 : vector<1x1024xf32>
    %c9 = arith.constant 9 : index
    %26 = memref.load %arg1[%c9] : memref<10xf32, #tpu.memory_space<smem>>
    %27 = vector.broadcast %26 : f32 to vector<1x1024xf32>
    %28 = arith.addf %25, %27 : vector<1x1024xf32>
    %c3 = arith.constant 3 : index
    %29 = memref.load %arg1[%c3] : memref<10xf32, #tpu.memory_space<smem>>
    %30 = vector.broadcast %29 : f32 to vector<1x1024xf32>
    %31 = arith.mulf %2, %30 : vector<1x1024xf32>
    %32 = arith.addf %28, %31 : vector<1x1024xf32>
    %c5 = arith.constant 5 : index
    %33 = memref.load %arg1[%c5] : memref<10xf32, #tpu.memory_space<smem>>
    %34 = vector.broadcast %33 : f32 to vector<1x1024xf32>
    %35 = arith.mulf %3, %34 : vector<1x1024xf32>
    %36 = arith.addf %32, %35 : vector<1x1024xf32>
    %c7 = arith.constant 7 : index
    %37 = memref.load %arg1[%c7] : memref<10xf32, #tpu.memory_space<smem>>
    %38 = vector.broadcast %37 : f32 to vector<1x1024xf32>
    %39 = arith.mulf %4, %38 : vector<1x1024xf32>
    %40 = arith.addf %36, %39 : vector<1x1024xf32>
    %41 = tpu.concatenate %22, %40 in 0 : vector<1x1024xf32>, vector<1x1024xf32> -> vector<2x1024xf32>
    %c0_2 = arith.constant 0 : index
    %c0_3 = arith.constant 0 : index
    %42 = vector.load %arg3[%c0_2, %c0_3] : memref<2x1024xf32, #tpu.memory_space<vmem>>, vector<2x1024xf32>
    tpu.vector_store %arg3[%c0_2, %c0_3], %41 {strides = array<i32>} : memref<2x1024xf32, #tpu.memory_space<vmem>>, vector<2x1024xf32>,
    return
  }
  func.func @transform_0(%arg0: i32) -> i32 {
    %c0_i32 = arith.constant 0 : i32
    %c0_i32_0 = arith.constant 0 : i32
    return %c0_i32 : i32
  }
  func.func @transform_1(%arg0: i32) -> (i32, i32) {
    %c0_i32 = arith.constant 0 : i32
    %c0_i32_0 = arith.constant 0 : i32
    return %c0_i32, %arg0 : i32, i32
  }
  func.func @transform_2(%arg0: i32) -> (i32, i32) {
    %c0_i32 = arith.constant 0 : i32
    %c0_i32_0 = arith.constant 0 : i32
    return %c0_i32, %arg0 : i32, i32
  }
}

</mosaic_0001>

<llo_original>
// kernel: cpu_offload_model_forward.1
$region0: #{cpu_offload_model_forward.1}
  #allocation0 [shape = 'u32[]', space=smem, size = 0x4, offset = 0x4, fixed_abs, tag = 'smem constant byte address 0x4 - core index']
  #allocation1 [shape = 'u32[144,128]{1,0:T(1,128)}', space=vmem, size = 0x12000, scoped, tag = 'internal scratch']
  %s0 = inlined_call_operand.vmem [shape: f32[10], index: 0, kind: input, shape index: {}]
  %s1 = inlined_call_operand.hbm [shape: f32[4,1024], index: 1, kind: input, shape index: {}]
  %s2 = inlined_call_operand.hbm [shape: f32[2,1024], index: 2, kind: output, shape index: {}]
  %s3 = sld [smem:[#allocation0]]
  $region26: #{cpu_offload_model_forward.1} parent=0
    _
  %s5 = ssub.s32 1, %s3
  %s6 = scalar_select 0, %s5, %s3
  $region1: #{cpu_offload_model_forward.1} parent=0
    #allocation2 [shape = 'u8[512]{0}', space=smem, size = 0x200, scoped, tag = 'input window, operand 0, single buffered']
    #allocation3 [shape = 's32[1]{0}', space=sflag, size = 0x4, scoped, tag = 'scoped memory for cpu_offload_model_forward.1']
    #allocation4 [shape = 's32[1]{0}', space=sflag, size = 0x4, scoped, tag = 'scoped memory for cpu_offload_model_forward.1']
    #allocation5 [shape = 's32[1]{0}', space=sflag, size = 0x4, scoped, tag = 'scoped memory for cpu_offload_model_forward.1']
    #allocation6 [shape = 'u8[16384]{0}', space=vmem, size = 0x4000, scoped, tag = 'input window, operand 1, single buffered']
    #allocation7 [shape = 'u8[8192]{0}', space=vmem, size = 0x2000, scoped, tag = 'output window, operand 0, single buffered']
    %7 = vsyncpa [#allocation5], 0
    %8 = vsyncpa [#allocation3], 0
    %9 = vsyncpa [#allocation4], 0
    // Predicated region
    $region2: #{cpu_offload_model_forward.1} parent=1 // pred_check
      _
    $region3: #{cpu_offload_model_forward.1} parent=1 // pred_check_branch
      %11 = sbr.rel (0) target = $region5
    $region4: #{cpu_offload_model_forward.1} parent=1 // pred_region
      %s13 = ssub.s32 16, 16
      %14 = vsyncadd [#allocation5], %s13
      %s16 = sshll.u32 %s0, 4
      %s17 = int_to_ptr.vmem [resolvable:$true] %s16
      %19 = dma.vmem_to_smem %s17, 16, [#allocation2], [#allocation5]
    $region5: #{cpu_offload_model_forward.1} parent=1 // pred_fallthru
      _
    // Predicated region
    $region6: #{cpu_offload_model_forward.1} parent=1 // pred_check
      _
    $region7: #{cpu_offload_model_forward.1} parent=1 // pred_check_branch
      %21 = sbr.rel (0) target = $region9
    $region8: #{cpu_offload_model_forward.1} parent=1 // pred_region
      %s23 = ssub.s32 512, 512
      %24 = vsyncadd [#allocation3], %s23
      %s26 = sshll.u32 [#allocation6], 4
      %s27 = int_to_ptr.vmem [resolvable:$true] %s26
      %29 = dma.hbm_to_vmem [thread:$0]  %s1, 512, %s27, [#allocation3]
    $region9: #{cpu_offload_model_forward.1} parent=1 // pred_fallthru
      _
    // Predicated region
    $region10: #{cpu_offload_model_forward.1} parent=1 // pred_check
      _
    $region11: #{cpu_offload_model_forward.1} parent=1 // pred_check_branch
      %31 = sbr.rel (0) target = $region13
    $region12: #{cpu_offload_model_forward.1} parent=1 // pred_region
      %32 = dma.done [#allocation5], 16
    $region13: #{cpu_offload_model_forward.1} parent=1 // pred_fallthru
      _
    // Predicated region
    $region14: #{cpu_offload_model_forward.1} parent=1 // pred_check
      _
    $region15: #{cpu_offload_model_forward.1} parent=1 // pred_check_branch
      %34 = sbr.rel (0) target = $region17
    $region16: #{cpu_offload_model_forward.1} parent=1 // pred_region
      %35 = dma.done [#allocation3], 512
    $region17: #{cpu_offload_model_forward.1} parent=1 // pred_fallthru
      _
    %36 = sfence
    %v37 = vld [vmem:[#allocation6] sm:$0xff]
    %v38 = vld [vmem:[#allocation6 + $0x8] sm:$0xff]
    %v39 = vld [vmem:[#allocation6 + $0x10] sm:$0xff]
    %v40 = vld [vmem:[#allocation6 + $0x18] sm:$0xff]
    %s41 = sld [smem:[#allocation2]]
    %v42 = vstv %s41
    %v43 = vmul.f32 %v37, %v42
    %v44 = vmul.f32 %v38, %v42
    %v45 = vmul.f32 %v39, %v42
    %v46 = vmul.f32 %v40, %v42
    %s47 = sld [smem:[#allocation2 + $0x8]]
    %v48 = vstv %s47
    %v49 = vadd.f32 %v43, %v48
    %v50 = vadd.f32 %v44, %v48
    %v51 = vadd.f32 %v45, %v48
    %v52 = vadd.f32 %v46, %v48
    %s53 = sld [smem:[#allocation2 + $0x2]]
    %v54 = vstv %s53
    %v55 = vmul.f32 %v37, %v54
    %v56 = vmul.f32 %v38, %v54
    %v57 = vmul.f32 %v39, %v54
    %v58 = vmul.f32 %v40, %v54
    %v63 = vrot.slane %v55, 5
    %v64 = vrot.slane %v63, 4
    %v65 = vrot.slane %v56, 5
    %v66 = vrot.slane %v65, 4
    %v67 = vrot.slane %v57, 5
    %v68 = vrot.slane %v67, 4
    %v69 = vrot.slane %v58, 5
    %v70 = vrot.slane %v69, 4
    %v75 = vadd.f32 %v49, %v64
    %v76 = vadd.f32 %v50, %v66
    %v77 = vadd.f32 %v51, %v68
    %v78 = vadd.f32 %v52, %v70
    %s79 = sld [smem:[#allocation2 + $0x4]]
    %v80 = vstv %s79
    %v81 = vmul.f32 %v37, %v80
    %v82 = vmul.f32 %v38, %v80
    %v83 = vmul.f32 %v39, %v80
    %v84 = vmul.f32 %v40, %v80
    %v89 = vrot.slane %v81, 6
    %v90 = vrot.slane %v89, 4
    %v91 = vrot.slane %v82, 6
    %v92 = vrot.slane %v91, 4
    %v93 = vrot.slane %v83, 6
    %v94 = vrot.slane %v93, 4
    %v95 = vrot.slane %v84, 6
    %v96 = vrot.slane %v95, 4
    %v101 = vadd.f32 %v75, %v90
    %v102 = vadd.f32 %v76, %v92
    %v103 = vadd.f32 %v77, %v94
    %v104 = vadd.f32 %v78, %v96
    %s105 = sld [smem:[#allocation2 + $0x6]]
    %v106 = vstv %s105
    %v107 = vmul.f32 %v37, %v106
    %v108 = vmul.f32 %v38, %v106
    %v109 = vmul.f32 %v39, %v106
    %v110 = vmul.f32 %v40, %v106
    %v115 = vrot.slane %v107, 7
    %v116 = vrot.slane %v115, 4
    %v117 = vrot.slane %v108, 7
    %v118 = vrot.slane %v117, 4
    %v119 = vrot.slane %v109, 7
    %v120 = vrot.slane %v119, 4
    %v121 = vrot.slane %v110, 7
    %v122 = vrot.slane %v121, 4
    %v127 = vadd.f32 %v101, %v116
    %v128 = vadd.f32 %v102, %v118
    %v129 = vadd.f32 %v103, %v120
    %v130 = vadd.f32 %v104, %v122
    %s131 = sld [smem:[#allocation2 + $0x1]]
    %v132 = vstv %s131
    %v133 = vmul.f32 %v37, %v132
    %v134 = vmul.f32 %v38, %v132
    %v135 = vmul.f32 %v39, %v132
    %v136 = vmul.f32 %v40, %v132
    %s137 = sld [smem:[#allocation2 + $0x9]]
    %v138 = vstv %s137
    %v139 = vadd.f32 %v133, %v138
    %v140 = vadd.f32 %v134, %v138
    %v141 = vadd.f32 %v135, %v138
    %v142 = vadd.f32 %v136, %v138
    %s143 = sld [smem:[#allocation2 + $0x3]]
    %v144 = vstv %s143
    %v145 = vmul.f32 %v37, %v144
    %v146 = vmul.f32 %v38, %v144
    %v147 = vmul.f32 %v39, %v144
    %v148 = vmul.f32 %v40, %v144
    %v153 = vrot.slane %v145, 5
    %v154 = vrot.slane %v153, 4
    %v155 = vrot.slane %v146, 5
    %v156 = vrot.slane %v155, 4
    %v157 = vrot.slane %v147, 5
    %v158 = vrot.slane %v157, 4
    %v159 = vrot.slane %v148, 5
    %v160 = vrot.slane %v159, 4
    %v165 = vadd.f32 %v139, %v154
    %v166 = vadd.f32 %v140, %v156
    %v167 = vadd.f32 %v141, %v158
    %v168 = vadd.f32 %v142, %v160
    %s169 = sld [smem:[#allocation2 + $0x5]]
    %v170 = vstv %s169
    %v171 = vmul.f32 %v37, %v170
    %v172 = vmul.f32 %v38, %v170
    %v173 = vmul.f32 %v39, %v170
    %v174 = vmul.f32 %v40, %v170
    %v179 = vrot.slane %v171, 6
    %v180 = vrot.slane %v179, 4
    %v181 = vrot.slane %v172, 6
    %v182 = vrot.slane %v181, 4
    %v183 = vrot.slane %v173, 6
    %v184 = vrot.slane %v183, 4
    %v185 = vrot.slane %v174, 6
    %v186 = vrot.slane %v185, 4
    %v191 = vadd.f32 %v165, %v180
    %v192 = vadd.f32 %v166, %v182
    %v193 = vadd.f32 %v167, %v184
    %v194 = vadd.f32 %v168, %v186
    %s195 = sld [smem:[#allocation2 + $0x7]]
    %v196 = vstv %s195
    %v197 = vmul.f32 %v37, %v196
    %v198 = vmul.f32 %v38, %v196
    %v199 = vmul.f32 %v39, %v196
    %v200 = vmul.f32 %v40, %v196
    %v205 = vrot.slane %v197, 7
    %v206 = vrot.slane %v205, 4
    %v207 = vrot.slane %v198, 7
    %v208 = vrot.slane %v207, 4
    %v209 = vrot.slane %v199, 7
    %v210 = vrot.slane %v209, 4
    %v211 = vrot.slane %v200, 7
    %v212 = vrot.slane %v211, 4
    %v217 = vadd.f32 %v191, %v206
    %v218 = vadd.f32 %v192, %v208
    %v219 = vadd.f32 %v193, %v210
    %v220 = vadd.f32 %v194, %v212
    %v225 = vlaneseq
    %v226 = vshrl.u32 %v225, 7
    %v227 = vsub.s32 0, %v226
    %v228 = vrot.slane %v127, %v227
    %v229 = vlaneseq
    %v230 = vshrl.u32 %v229, 7
    %v231 = vsub.s32 4, %v230
    %v232 = vrot.slane %v127, %v231
    %v233 = vlaneseq
    %v234 = vshrl.u32 %v233, 7
    %v235 = vsub.s32 0, %v234
    %v236 = vrot.slane %v128, %v235
    %v237 = vlaneseq
    %v238 = vshrl.u32 %v237, 7
    %v239 = vsub.s32 4, %v238
    %v240 = vrot.slane %v128, %v239
    %v241 = vlaneseq
    %v242 = vshrl.u32 %v241, 7
    %v243 = vsub.s32 0, %v242
    %v244 = vrot.slane %v129, %v243
    %v245 = vlaneseq
    %v246 = vshrl.u32 %v245, 7
    %v247 = vsub.s32 4, %v246
    %v248 = vrot.slane %v129, %v247
    %v249 = vlaneseq
    %v250 = vshrl.u32 %v249, 7
    %v251 = vsub.s32 0, %v250
    %v252 = vrot.slane %v130, %v251
    %v253 = vlaneseq
    %v254 = vshrl.u32 %v253, 7
    %v255 = vsub.s32 4, %v254
    %v256 = vrot.slane %v130, %v255
    %v269 = vlaneseq
    %v270 = vshrl.u32 %v269, 7
    %v271 = vsub.s32 0, %v270
    %v272 = vrot.slane %v217, %v271
    %v273 = vlaneseq
    %v274 = vshrl.u32 %v273, 7
    %v275 = vsub.s32 4, %v274
    %v276 = vrot.slane %v217, %v275
    %v277 = vlaneseq
    %v278 = vshrl.u32 %v277, 7
    %v279 = vsub.s32 0, %v278
    %v280 = vrot.slane %v218, %v279
    %v281 = vlaneseq
    %v282 = vshrl.u32 %v281, 7
    %v283 = vsub.s32 4, %v282
    %v284 = vrot.slane %v218, %v283
    %v285 = vlaneseq
    %v286 = vshrl.u32 %v285, 7
    %v287 = vsub.s32 0, %v286
    %v288 = vrot.slane %v219, %v287
    %v289 = vlaneseq
    %v290 = vshrl.u32 %v289, 7
    %v291 = vsub.s32 4, %v290
    %v292 = vrot.slane %v219, %v291
    %v293 = vlaneseq
    %v294 = vshrl.u32 %v293, 7
    %v295 = vsub.s32 0, %v294
    %v296 = vrot.slane %v220, %v295
    %v297 = vlaneseq
    %v298 = vshrl.u32 %v297, 7
    %v299 = vsub.s32 4, %v298
    %v300 = vrot.slane %v220, %v299
    %vm309 = vcmask 1040384
    %v310 = vsel %vm309, %v228, %v272
    %v311 = vsel %vm309, %v232, %v276
    %v312 = vsel %vm309, %v236, %v280
    %v313 = vsel %vm309, %v240, %v284
    %v314 = vsel %vm309, %v244, %v288
    %v315 = vsel %vm309, %v248, %v292
    %v316 = vsel %vm309, %v252, %v296
    %v317 = vsel %vm309, %v256, %v300
    %v326 = vcombine.low %v310, %v311
    %v327 = vcombine.low %v312, %v313
    %v329 = vunpack.c.l.s4 1983009808
    %v330 = vunpack.c.0.s8 %v329
    %v331 = vlaneseq
    %v332 = vshrl.u32 %v331, 7
    %v333 = vsub.s32 %v330, %v332
    %v334 = vrot.slane %v326, %v333
    %v336 = vunpack.c.l.s4 1983009808
    %v337 = vunpack.c.0.s8 %v336
    %v338 = vlaneseq
    %v339 = vshrl.u32 %v338, 7
    %v340 = vsub.s32 %v337, %v339
    %v341 = vrot.slane %v327, %v340
    %v342 = vcombine.low %v334, %v341
    %v343 = vcombine.low %v314, %v315
    %v344 = vcombine.low %v316, %v317
    %v346 = vunpack.c.l.s4 1983009808
    %v347 = vunpack.c.0.s8 %v346
    %v348 = vlaneseq
    %v349 = vshrl.u32 %v348, 7
    %v350 = vsub.s32 %v347, %v349
    %v351 = vrot.slane %v343, %v350
    %v353 = vunpack.c.l.s4 1983009808
    %v354 = vunpack.c.0.s8 %v353
    %v355 = vlaneseq
    %v356 = vshrl.u32 %v355, 7
    %v357 = vsub.s32 %v354, %v356
    %v358 = vrot.slane %v344, %v357
    %v359 = vcombine.low %v351, %v358
    %362 = vst [vmem:[#allocation7] sm:$0xff] %v342
    %363 = vst [vmem:[#allocation7 + $0x8] sm:$0xff] %v359
    // Predicated region
    $region18: #{cpu_offload_model_forward.1} parent=1 // pred_check
      _
    $region19: #{cpu_offload_model_forward.1} parent=1 // pred_check_branch
      %365 = sbr.rel (0) target = $region21
    $region20: #{cpu_offload_model_forward.1} parent=1 // pred_region
      %s367 = ssub.s32 256, 256
      %368 = vsyncadd [#allocation4], %s367
      %s370 = sshll.u32 [#allocation7], 4
      %s371 = int_to_ptr.vmem [resolvable:$true] %s370
      %373 = dma.vmem_to_hbm [thread:$0]  %s371, 256, %s2, [#allocation4]
    $region21: #{cpu_offload_model_forward.1} parent=1 // pred_fallthru
      _
    // Predicated region
    $region22: #{cpu_offload_model_forward.1} parent=1 // pred_check
      _
    $region23: #{cpu_offload_model_forward.1} parent=1 // pred_check_branch
      %375 = sbr.rel (0) target = $region25
    $region24: #{cpu_offload_model_forward.1} parent=1 // pred_region
      %376 = dma.done [#allocation4], 256
    $region25: #{cpu_offload_model_forward.1} parent=1 // pred_fallthru
      _
    %377 = vsyncpa [#allocation3], 1
    %378 = vsyncpa [#allocation4], 1
    %379 = vsyncpa [#allocation5], 1

</llo_original>
